<compile_context>
chip_gen: v7x
topology: tpu7x:2x2x1
jax: 0.10.0
libtpu: 0.0.40
codegen_flags: <defaults>
</compile_context>

<pallas_src>
import functools

import jax
import jax.numpy as jnp
from jax.experimental import pallas as pl
from jax.experimental.pallas import tpu as pltpu


NEG_SLOPE = 0.01  # PyTorch nn.LeakyReLU default negative_slope
LANE = 128
SUBLANE = 8


def _leaky_relu(x):
    return jnp.where(x > 0, x, NEG_SLOPE * x)


def _round_up(x, m):
    return ((x + m - 1) // m) * m


def _dqn_q_func_kernel(
    # activations (one batch tile per grid step)
    x1_ref, x2_ref,
    # fused currency-encoder params (lane-disjoint padded weights, concat bias)
    we1_ref, we2_ref, be_ref,
    # MLP params (w1 K-padded to the encoder lane width; w3/b3 lane-padded)
    w1_ref, b1_ref, w2_ref, b2_ref, w3_ref, b3_ref,
    # output (lane-padded to 128)
    out_ref,
):
    bf16 = jnp.bfloat16

    # Fused currency encoders: the two matmuls write disjoint lane ranges of
    # the same 128-lane output, so a simple add replaces the hstack/concat.
    # Padded lanes: zero weights + zero bias -> leaky(0) = 0 (safe for w1).
    enc = _leaky_relu(
        jnp.dot(x1_ref[...].astype(bf16), we1_ref[...],
                preferred_element_type=jnp.float32)
        + jnp.dot(x2_ref[...].astype(bf16), we2_ref[...],
                  preferred_element_type=jnp.float32)
        + be_ref[...]
    ).astype(bf16)

    h1 = _leaky_relu(
        jnp.dot(enc, w1_ref[...], preferred_element_type=jnp.float32)
        + b1_ref[...]
    )
    h2 = _leaky_relu(
        jnp.dot(h1.astype(bf16), w2_ref[...],
                preferred_element_type=jnp.float32) + b2_ref[...]
    )
    # Final layer (no activation); output lanes padded to 128, lane-dense store.
    out_ref[...] = (
        jnp.dot(h2.astype(bf16), w3_ref[...],
                preferred_element_type=jnp.float32) + b3_ref[...]
    ).astype(out_ref.dtype)


@functools.partial(
    jax.jit,
    static_argnames=("action_space", "tile_batch", "min_grid_steps", "out_dtype"),
)
def dqn_q_func_forward(x1, x2, kparams, *, action_space, tile_batch=512,
                       min_grid_steps=2, out_dtype=jnp.float32):
    """Pallas forward: fused encoders -> 3-layer MLP.

    x1, x2:   [batch, feat_i] input windows (f32 or bf16).
    kparams:  kernel-ready params from _prepare_kernel_params (bf16 weights,
              f32 biases, encoder weights lane-padded/disjoint, head padded
              to 128 output lanes).
    out_dtype: jnp.float32 (exact head parity) or jnp.bfloat16 (halves the
              dominant HBM writeback stream; check argmax-tie sensitivity).
    """
    batch = x1.shape[0]
    feat1 = x1.shape[1]
    feat2 = x2.shape[1]

    tile_batch = _round_up(tile_batch, SUBLANE)

    # Choose the number of grid steps first, then derive the tile size so row
    # padding is at most a sublane round-up (<= 7 rows of waste).
    n_steps = pl.cdiv(batch, tile_batch)
    if batch > SUBLANE:
        # >= min_grid_steps steps so v7x's two TensorCores both get work.
        n_steps = max(n_steps, min_grid_steps)
    tb = _round_up(pl.cdiv(batch, n_steps), SUBLANE)
    padded_batch = n_steps * tb
    if padded_batch != batch:
        x1 = jnp.pad(x1, ((0, padded_batch - batch), (0, 0)))
        x2 = jnp.pad(x2, ((0, padded_batch - batch), (0, 0)))

    out_pad = kparams["w3"].shape[1]  # action_space padded to 128 lanes

    operands = (
        x1, x2,
        kparams["we1"], kparams["we2"], kparams["be"],
        kparams["w1"], kparams["b1"],
        kparams["w2"], kparams["b2"],
        kparams["w3"], kparams["b3"],
    )

    def batch_spec(ncols):
        return pl.BlockSpec((tb, ncols), lambda i: (i, 0))

    def resident_spec(shape):
        # Weights / biases: constant index_map -> DMA'd once, VMEM-resident.
        return pl.BlockSpec(shape, lambda i: (0, 0))

    in_specs = [
        batch_spec(feat1),                              # x1
        batch_spec(feat2),                              # x2
        resident_spec(kparams["we1"].shape),
        resident_spec(kparams["we2"].shape),
        resident_spec(kparams["be"].shape),
        resident_spec(kparams["w1"].shape),
        resident_spec(kparams["b1"].shape),
        resident_spec(kparams["w2"].shape),
        resident_spec(kparams["b2"].shape),
        resident_spec(kparams["w3"].shape),
        resident_spec(kparams["b3"].shape),
    ]

    out = pl.pallas_call(
        _dqn_q_func_kernel,
        out_shape=jax.ShapeDtypeStruct((padded_batch, out_pad), out_dtype),
        grid_spec=pltpu.PrefetchScalarGridSpec(
            num_scalar_prefetch=0,
            grid=(n_steps,),
            in_specs=in_specs,
            out_specs=pl.BlockSpec((tb, out_pad), lambda i: (i, 0)),
        ),
        compiler_params=pltpu.CompilerParams(
            dimension_semantics=("parallel",),   # shard batch tiles across TCs
        ),
    )(*operands)

    return out[:batch, :action_space]


def _init_params(key, feat1, feat2, out1, out2, action_space):
    """f32 reference parameters (PyTorch-style init), stored as x @ W + b."""
    ks = jax.random.split(key, 10)

    def lin(kw, kb, fan_in, fan_out):
        bound = 1.0 / jnp.sqrt(fan_in)
        w = jax.random.uniform(kw, (fan_in, fan_out), jnp.float32, -bound, bound)
        b = jax.random.uniform(kb, (1, fan_out), jnp.float32, -bound, bound)
        return w, b

    we1, be1 = lin(ks[0], ks[1], feat1, out1)
    we2, be2 = lin(ks[2], ks[3], feat2, out2)
    mlp_in = out1 + out2
    w1, b1 = lin(ks[4], ks[5], mlp_in, 512)
    w2, b2 = lin(ks[6], ks[7], 512, 256)
    w3, b3 = lin(ks[8], ks[9], 256, action_space)
    return {
        "we1": we1, "be1": be1, "we2": we2, "be2": be2,
        "w1": w1, "b1": b1, "w2": w2, "b2": b2, "w3": w3, "b3": b3,
    }


def _prepare_kernel_params(p, action_space):
    """One-time prep: bf16 MXU weights, f32 biases, fused/lane-padded encoders.

    - we1/we2 are zero-padded to a shared, lane-dense encoder width
      (round_up(out1+out2, 128)), occupying disjoint column ranges so the
      kernel never concatenates along lanes.
    - w1's K dim is zero-padded to match the padded encoder width.
    - w3/b3 are zero-padded to 128 output lanes.
    """
    out1 = p["we1"].shape[1]
    out2 = p["we2"].shape[1]
    mlp_in = out1 + out2
    enc_pad = _round_up(mlp_in, LANE)
    out_pad = _round_up(action_space, LANE)

    feat1 = p["we1"].shape[0]
    feat2 = p["we2"].shape[0]

    we1 = jnp.zeros((feat1, enc_pad), jnp.float32).at[:, :out1].set(p["we1"])
    we2 = jnp.zeros((feat2, enc_pad), jnp.float32).at[:, out1:mlp_in].set(p["we2"])
    be = (
        jnp.zeros((1, enc_pad), jnp.float32)
        .at[:, :out1].set(p["be1"][0])
        .at[:, out1:mlp_in].set(p["be2"][0])
    )
    w1 = jnp.zeros((enc_pad, p["w1"].shape[1]), jnp.float32).at[:mlp_in, :].set(p["w1"])
    w3 = jnp.zeros((p["w3"].shape[0], out_pad), jnp.float32).at[:, :action_space].set(p["w3"])
    b3 = jnp.zeros((1, out_pad), jnp.float32).at[:, :action_space].set(p["b3"][0])

    return {
        "we1": we1.astype(jnp.bfloat16),
        "we2": we2.astype(jnp.bfloat16),
        "be": be,
        "w1": w1.astype(jnp.bfloat16), "b1": p["b1"],
        "w2": p["w2"].astype(jnp.bfloat16), "b2": p["b2"],
        "w3": w3.astype(jnp.bfloat16), "b3": b3,
    }


def _reference_forward(x1, x2, p):
    """Pure-JAX f32 reference matching the PyTorch module."""
    e1 = _leaky_relu(x1 @ p["we1"] + p["be1"])
    e2 = _leaky_relu(x2 @ p["we2"] + p["be2"])
    mlp_in = jnp.concatenate([e1, e2], axis=1)           # torch.hstack
    h1 = _leaky_relu(mlp_in @ p["w1"] + p["b1"])
    h2 = _leaky_relu(h1 @ p["w2"] + p["b2"])
    return h2 @ p["w3"] + p["b3"]


if __name__ == "__main__":
    # Small shapes: two currency windows with 32 / 16 features, encoder
    # out_size 64 each -> mlp_in_size = 128, action_space = 6.
    FEAT1, FEAT2, OUT1, OUT2, ACTIONS = 32, 16, 64, 64, 6

    key = jax.random.PRNGKey(0)
    k_x1, k_x2, k_p = jax.random.split(key, 3)
    params = _init_params(k_p, FEAT1, FEAT2, OUT1, OUT2, ACTIONS)
    kparams = _prepare_kernel_params(params, ACTIONS)

    # Case 1: tiny batch -> single grid step (batch padded to sublane multiple).
    BATCH = 8
    x1 = jax.random.normal(k_x1, (BATCH, FEAT1), jnp.float32)
    x2 = jax.random.normal(k_x2, (BATCH, FEAT2), jnp.float32)
    q = dqn_q_func_forward(x1, x2, kparams, action_space=ACTIONS)
    jax.block_until_ready(q)
    ref = _reference_forward(x1, x2, params)
    assert q.shape == (BATCH, ACTIONS)
    # bf16 MXU inputs -> deliberately widened tolerance vs. the f32 reference.
    assert jnp.allclose(q, ref, rtol=5e-2, atol=5e-2)

    # Case 2: batch=136 -> 2 grid steps (tb=72), minimal row padding (8 rows).
    BATCH2 = 136
    k_y1, k_y2 = jax.random.split(jax.random.PRNGKey(1), 2)
    y1 = jax.random.normal(k_y1, (BATCH2, FEAT1), jnp.float32)
    y2 = jax.random.normal(k_y2, (BATCH2, FEAT2), jnp.float32)
    q2 = dqn_q_func_forward(y1, y2, kparams, action_space=ACTIONS)
    jax.block_until_ready(q2)
    ref2 = _reference_forward(y1, y2, params)
    assert q2.shape == (BATCH2, ACTIONS)
    assert jnp.allclose(q2, ref2, rtol=5e-2, atol=5e-2)

    # Case 3: bf16 output head (halved writeback stream) on a multi-step grid.
    q3 = dqn_q_func_forward(y1, y2, kparams, action_space=ACTIONS,
                            out_dtype=jnp.bfloat16)
    jax.block_until_ready(q3)
    assert q3.dtype == jnp.bfloat16
    assert jnp.allclose(q3.astype(jnp.float32), ref2, rtol=5e-2, atol=5e-2)

    print("KERNEL_OK")
</pallas_src>

<mosaic_0001>
module attributes {stable_mosaic.version = 11 : i64} {
  func.func @_dqn_q_func_kernel(%arg0: i32, %arg1: memref<8x32xf32, #tpu.memory_space<vmem>>, %arg2: memref<8x16xf32, #tpu.memory_space<vmem>>, %arg3: memref<32x128xbf16, #tpu.memory_space<vmem>>, %arg4: memref<16x128xbf16, #tpu.memory_space<vmem>>, %arg5: memref<1x128xf32, #tpu.memory_space<vmem>>, %arg6: memref<128x512xbf16, #tpu.memory_space<vmem>>, %arg7: memref<1x512xf32, #tpu.memory_space<vmem>>, %arg8: memref<512x256xbf16, #tpu.memory_space<vmem>>, %arg9: memref<1x256xf32, #tpu.memory_space<vmem>>, %arg10: memref<256x128xbf16, #tpu.memory_space<vmem>>, %arg11: memref<1x128xf32, #tpu.memory_space<vmem>>, %arg12: memref<8x128xf32, #tpu.memory_space<vmem>>) attributes {dimension_semantics = [#tpu.dimension_semantics<parallel>], iteration_bounds = array<i64: 1>, scalar_prefetch = 0 : i64, scratch_operands = 0 : i64, tpu.core_type = #tpu.core_type<tc>, window_params = [{transform_indices = @transform_0, window_bounds = array<i64: 8, 32>}, {transform_indices = @transform_1, window_bounds = array<i64: 8, 16>}, {pipeline_mode = #tpu.pipeline_mode<synchronous>, transform_indices = @transform_2, window_bounds = array<i64: 32, 128>}, {pipeline_mode = #tpu.pipeline_mode<synchronous>, transform_indices = @transform_3, window_bounds = array<i64: 16, 128>}, {pipeline_mode = #tpu.pipeline_mode<synchronous>, transform_indices = @transform_4, window_bounds = array<i64: 1, 128>}, {pipeline_mode = #tpu.pipeline_mode<synchronous>, transform_indices = @transform_5, window_bounds = array<i64: 128, 512>}, {pipeline_mode = #tpu.pipeline_mode<synchronous>, transform_indices = @transform_6, window_bounds = array<i64: 1, 512>}, {pipeline_mode = #tpu.pipeline_mode<synchronous>, transform_indices = @transform_7, window_bounds = array<i64: 512, 256>}, {pipeline_mode = #tpu.pipeline_mode<synchronous>, transform_indices = @transform_8, window_bounds = array<i64: 1, 256>}, {pipeline_mode = #tpu.pipeline_mode<synchronous>, transform_indices = @transform_9, window_bounds = array<i64: 256, 128>}, {pipeline_mode = #tpu.pipeline_mode<synchronous>, transform_indices = @transform_10, window_bounds = array<i64: 1, 128>}, {transform_indices = @transform_11, window_bounds = array<i64: 8, 128>}]} {
    %c0 = arith.constant 0 : index
    %c0_0 = arith.constant 0 : index
    %0 = vector.load %arg1[%c0, %c0_0] : memref<8x32xf32, #tpu.memory_space<vmem>>, vector<8x32xf32>
    %1 = arith.truncf %0 : vector<8x32xf32> to vector<8x32xbf16>
    %c0_1 = arith.constant 0 : index
    %c0_2 = arith.constant 0 : index
    %2 = vector.load %arg3[%c0_1, %c0_2] : memref<32x128xbf16, #tpu.memory_space<vmem>>, vector<32x128xbf16>
    %cst = arith.constant dense<0.000000e+00> : vector<8x128xf32>
    %3 = tpu.matmul %1, %2, %cst {dimension_numbers = #tpu.dot_dimension_numbers<[1], [0], [0], [1], [0, 0, 1, 1], [], []>} : vector<8x32xbf16>, vector<32x128xbf16>, vector<8x128xf32> -> vector<8x128xf32>
    %c0_3 = arith.constant 0 : index
    %c0_4 = arith.constant 0 : index
    %4 = vector.load %arg2[%c0_3, %c0_4] : memref<8x16xf32, #tpu.memory_space<vmem>>, vector<8x16xf32>
    %5 = arith.truncf %4 : vector<8x16xf32> to vector<8x16xbf16>
    %c0_5 = arith.constant 0 : index
    %c0_6 = arith.constant 0 : index
    %6 = vector.load %arg4[%c0_5, %c0_6] : memref<16x128xbf16, #tpu.memory_space<vmem>>, vector<16x128xbf16>
    %cst_7 = arith.constant dense<0.000000e+00> : vector<8x128xf32>
    %7 = tpu.matmul %5, %6, %cst_7 {dimension_numbers = #tpu.dot_dimension_numbers<[1], [0], [0], [1], [0, 0, 1, 1], [], []>} : vector<8x16xbf16>, vector<16x128xbf16>, vector<8x128xf32> -> vector<8x128xf32>
    %8 = arith.addf %3, %7 : vector<8x128xf32>
    %c0_8 = arith.constant 0 : index
    %c0_9 = arith.constant 0 : index
    %9 = vector.load %arg5[%c0_8, %c0_9] : memref<1x128xf32, #tpu.memory_space<vmem>>, vector<1x128xf32>
    %10 = vector.broadcast %9 : vector<1x128xf32> to vector<8x128xf32>
    %11 = arith.addf %8, %10 : vector<8x128xf32>
    %cst_10 = arith.constant 0.000000e+00 : f32
    %12 = vector.broadcast %cst_10 : f32 to vector<8x128xf32>
    %13 = arith.cmpf ogt, %11, %12 : vector<8x128xf32>
    %cst_11 = arith.constant 0.00999999977 : f32
    %14 = vector.broadcast %cst_11 : f32 to vector<8x128xf32>
    %15 = arith.mulf %14, %11 : vector<8x128xf32>
    %16 = arith.select %13, %11, %15 : vector<8x128xi1>, vector<8x128xf32>
    %17 = arith.truncf %16 : vector<8x128xf32> to vector<8x128xbf16>
    %c0_12 = arith.constant 0 : index
    %c0_13 = arith.constant 0 : index
    %18 = vector.load %arg6[%c0_12, %c0_13] : memref<128x512xbf16, #tpu.memory_space<vmem>>, vector<128x512xbf16>
    %cst_14 = arith.constant dense<0.000000e+00> : vector<8x512xf32>
    %19 = tpu.matmul %17, %18, %cst_14 {dimension_numbers = #tpu.dot_dimension_numbers<[1], [0], [0], [1], [0, 0, 1, 1], [], []>} : vector<8x128xbf16>, vector<128x512xbf16>, vector<8x512xf32> -> vector<8x512xf32>
    %c0_15 = arith.constant 0 : index
    %c0_16 = arith.constant 0 : index
    %20 = vector.load %arg7[%c0_15, %c0_16] : memref<1x512xf32, #tpu.memory_space<vmem>>, vector<1x512xf32>
    %21 = vector.broadcast %20 : vector<1x512xf32> to vector<8x512xf32>
    %22 = arith.addf %19, %21 : vector<8x512xf32>
    %cst_17 = arith.constant 0.000000e+00 : f32
    %23 = vector.broadcast %cst_17 : f32 to vector<8x512xf32>
    %24 = arith.cmpf ogt, %22, %23 : vector<8x512xf32>
    %cst_18 = arith.constant 0.00999999977 : f32
    %25 = vector.broadcast %cst_18 : f32 to vector<8x512xf32>
    %26 = arith.mulf %25, %22 : vector<8x512xf32>
    %27 = arith.select %24, %22, %26 : vector<8x512xi1>, vector<8x512xf32>
    %28 = arith.truncf %27 : vector<8x512xf32> to vector<8x512xbf16>
    %c0_19 = arith.constant 0 : index
    %c0_20 = arith.constant 0 : index
    %29 = vector.load %arg8[%c0_19, %c0_20] : memref<512x256xbf16, #tpu.memory_space<vmem>>, vector<512x256xbf16>
    %cst_21 = arith.constant dense<0.000000e+00> : vector<8x256xf32>
    %30 = tpu.matmul %28, %29, %cst_21 {dimension_numbers = #tpu.dot_dimension_numbers<[1], [0], [0], [1], [0, 0, 1, 1], [], []>} : vector<8x512xbf16>, vector<512x256xbf16>, vector<8x256xf32> -> vector<8x256xf32>
    %c0_22 = arith.constant 0 : index
    %c0_23 = arith.constant 0 : index
    %31 = vector.load %arg9[%c0_22, %c0_23] : memref<1x256xf32, #tpu.memory_space<vmem>>, vector<1x256xf32>
    %32 = vector.broadcast %31 : vector<1x256xf32> to vector<8x256xf32>
    %33 = arith.addf %30, %32 : vector<8x256xf32>
    %cst_24 = arith.constant 0.000000e+00 : f32
    %34 = vector.broadcast %cst_24 : f32 to vector<8x256xf32>
    %35 = arith.cmpf ogt, %33, %34 : vector<8x256xf32>
    %cst_25 = arith.constant 0.00999999977 : f32
    %36 = vector.broadcast %cst_25 : f32 to vector<8x256xf32>
    %37 = arith.mulf %36, %33 : vector<8x256xf32>
    %38 = arith.select %35, %33, %37 : vector<8x256xi1>, vector<8x256xf32>
    %39 = arith.truncf %38 : vector<8x256xf32> to vector<8x256xbf16>
    %c0_26 = arith.constant 0 : index
    %c0_27 = arith.constant 0 : index
    %40 = vector.load %arg10[%c0_26, %c0_27] : memref<256x128xbf16, #tpu.memory_space<vmem>>, vector<256x128xbf16>
    %cst_28 = arith.constant dense<0.000000e+00> : vector<8x128xf32>
    %41 = tpu.matmul %39, %40, %cst_28 {dimension_numbers = #tpu.dot_dimension_numbers<[1], [0], [0], [1], [0, 0, 1, 1], [], []>} : vector<8x256xbf16>, vector<256x128xbf16>, vector<8x128xf32> -> vector<8x128xf32>
    %c0_29 = arith.constant 0 : index
    %c0_30 = arith.constant 0 : index
    %42 = vector.load %arg11[%c0_29, %c0_30] : memref<1x128xf32, #tpu.memory_space<vmem>>, vector<1x128xf32>
    %43 = vector.broadcast %42 : vector<1x128xf32> to vector<8x128xf32>
    %44 = arith.addf %41, %43 : vector<8x128xf32>
    %c0_31 = arith.constant 0 : index
    %c0_32 = arith.constant 0 : index
    %45 = vector.load %arg12[%c0_31, %c0_32] : memref<8x128xf32, #tpu.memory_space<vmem>>, vector<8x128xf32>
    tpu.vector_store %arg12[%c0_31, %c0_32], %44 {strides = array<i32>} : memref<8x128xf32, #tpu.memory_space<vmem>>, vector<8x128xf32>,
    return
  }
  func.func @transform_0(%arg0: i32) -> (i32, i32) {
    %c0_i32 = arith.constant 0 : i32
    %c0_i32_0 = arith.constant 0 : i32
    return %arg0, %c0_i32 : i32, i32
  }
  func.func @transform_1(%arg0: i32) -> (i32, i32) {
    %c0_i32 = arith.constant 0 : i32
    %c0_i32_0 = arith.constant 0 : i32
    return %arg0, %c0_i32 : i32, i32
  }
  func.func @transform_2(%arg0: i32) -> (i32, i32) {
    %c0_i32 = arith.constant 0 : i32
    %c0_i32_0 = arith.constant 0 : i32
    %c0_i32_1 = arith.constant 0 : i32
    return %c0_i32, %c0_i32_0 : i32, i32
  }
  func.func @transform_3(%arg0: i32) -> (i32, i32) {
    %c0_i32 = arith.constant 0 : i32
    %c0_i32_0 = arith.constant 0 : i32
    %c0_i32_1 = arith.constant 0 : i32
    return %c0_i32, %c0_i32_0 : i32, i32
  }
  func.func @transform_4(%arg0: i32) -> (i32, i32) {
    %c0_i32 = arith.constant 0 : i32
    %c0_i32_0 = arith.constant 0 : i32
    %c0_i32_1 = arith.constant 0 : i32
    return %c0_i32, %c0_i32_0 : i32, i32
  }
  func.func @transform_5(%arg0: i32) -> (i32, i32) {
    %c0_i32 = arith.constant 0 : i32
    %c0_i32_0 = arith.constant 0 : i32
    %c0_i32_1 = arith.constant 0 : i32
    return %c0_i32, %c0_i32_0 : i32, i32
  }
  func.func @transform_6(%arg0: i32) -> (i32, i32) {
    %c0_i32 = arith.constant 0 : i32
    %c0_i32_0 = arith.constant 0 : i32
    %c0_i32_1 = arith.constant 0 : i32
    return %c0_i32, %c0_i32_0 : i32, i32
  }
  func.func @transform_7(%arg0: i32) -> (i32, i32) {
    %c0_i32 = arith.constant 0 : i32
    %c0_i32_0 = arith.constant 0 : i32
    %c0_i32_1 = arith.constant 0 : i32
    return %c0_i32, %c0_i32_0 : i32, i32
  }
  func.func @transform_8(%arg0: i32) -> (i32, i32) {
    %c0_i32 = arith.constant 0 : i32
    %c0_i32_0 = arith.constant 0 : i32
    %c0_i32_1 = arith.constant 0 : i32
    return %c0_i32, %c0_i32_0 : i32, i32
  }
  func.func @transform_9(%arg0: i32) -> (i32, i32) {
    %c0_i32 = arith.constant 0 : i32
    %c0_i32_0 = arith.constant 0 : i32
    %c0_i32_1 = arith.constant 0 : i32
    return %c0_i32, %c0_i32_0 : i32, i32
  }
  func.func @transform_10(%arg0: i32) -> (i32, i32) {
    %c0_i32 = arith.constant 0 : i32
    %c0_i32_0 = arith.constant 0 : i32
    %c0_i32_1 = arith.constant 0 : i32
    return %c0_i32, %c0_i32_0 : i32, i32
  }
  func.func @transform_11(%arg0: i32) -> (i32, i32) {
    %c0_i32 = arith.constant 0 : i32
    %c0_i32_0 = arith.constant 0 : i32
    return %arg0, %c0_i32 : i32, i32
  }
}

</mosaic_0001>

<llo_original>
// kernel: dqn_q_func_forward.1
$region0: #{dqn_q_func_forward.1}
  #allocation0 [shape = 'u32[]', space=smem, size = 0x4, offset = 0x4, fixed_abs, tag = 'smem constant byte address 0x4 - core index']
  #allocation1 [shape = 'u32[144,128]{1,0:T(1,128)}', space=vmem, size = 0x12000, scoped, tag = 'internal scratch']
  %s0 = inlined_call_operand.hbm [shape: f32[8,32], index: 0, kind: input, shape index: {}]
  %s1 = inlined_call_operand.hbm [shape: f32[8,16], index: 1, kind: input, shape index: {}]
  %s2 = inlined_call_operand.vmem [shape: bf16[32,128], index: 2, kind: input, shape index: {}]
  %s3 = inlined_call_operand.vmem [shape: bf16[16,128], index: 3, kind: input, shape index: {}]
  %s4 = inlined_call_operand.hbm [shape: f32[1,128], index: 4, kind: input, shape index: {}]
  %s5 = inlined_call_operand.hbm [shape: bf16[128,512], index: 5, kind: input, shape index: {}]
  %s6 = inlined_call_operand.vmem [shape: f32[1,512], index: 6, kind: input, shape index: {}]
  %s7 = inlined_call_operand.hbm [shape: bf16[512,256], index: 7, kind: input, shape index: {}]
  %s8 = inlined_call_operand.vmem [shape: f32[1,256], index: 8, kind: input, shape index: {}]
  %s9 = inlined_call_operand.hbm [shape: bf16[256,128], index: 9, kind: input, shape index: {}]
  %s10 = inlined_call_operand.hbm [shape: f32[1,128], index: 10, kind: input, shape index: {}]
  %s11 = inlined_call_operand.hbm [shape: f32[8,128], index: 11, kind: output, shape index: {}]
  %s12 = sld [smem:[#allocation0]]
  $region82: #{dqn_q_func_forward.1} parent=0
    _
  %s14 = ssub.s32 1, %s12
  %s15 = scalar_select 0, %s14, %s12
  $region1: #{dqn_q_func_forward.1} parent=0
    #allocation2 [shape = 'u8[4096]{0}', space=vmem, size = 0x1000, scoped, tag = 'input window, operand 0, single buffered']
    #allocation3 [shape = 's32[1]{0}', space=sflag, size = 0x4, scoped, tag = 'scoped memory for dqn_q_func_forward.1']
    #allocation4 [shape = 's32[1]{0}', space=sflag, size = 0x4, scoped, tag = 'scoped memory for dqn_q_func_forward.1']
    #allocation5 [shape = 'u8[4096]{0}', space=vmem, size = 0x1000, scoped, tag = 'input window, operand 1, single buffered']
    #allocation6 [shape = 's32[1]{0}', space=sflag, size = 0x4, scoped, tag = 'scoped memory for dqn_q_func_forward.1']
    #allocation7 [shape = 'u8[512]{0}', space=vmem, size = 0x400, scoped, tag = 'input window, operand 4, single buffered']
    #allocation8 [shape = 'u8[131072]{0}', space=vmem, size = 0x20000, scoped, tag = 'input window, operand 5, single buffered']
    #allocation9 [shape = 's32[1]{0}', space=sflag, size = 0x4, scoped, tag = 'scoped memory for dqn_q_func_forward.1']
    #allocation10 [shape = 'u8[262144]{0}', space=vmem, size = 0x40000, scoped, tag = 'input window, operand 7, single buffered']
    #allocation11 [shape = 'u8[65536]{0}', space=vmem, size = 0x10000, scoped, tag = 'input window, operand 9, single buffered']
    #allocation12 [shape = 's32[1]{0}', space=sflag, size = 0x4, scoped, tag = 'scoped memory for dqn_q_func_forward.1']
    #allocation13 [shape = 'u8[512]{0}', space=vmem, size = 0x400, scoped, tag = 'input window, operand 10, single buffered']
    #allocation14 [shape = 'u8[4096]{0}', space=vmem, size = 0x1000, scoped, tag = 'output window, operand 0, single buffered']
    %16 = vsyncpa [#allocation3], 0
    %17 = vsyncpa [#allocation6], 0
    %18 = vsyncpa [#allocation9], 0
    %19 = vsyncpa [#allocation12], 0
    %20 = vsyncpa [#allocation4], 0
    // Predicated region
    $region2: #{dqn_q_func_forward.1} parent=1 // pred_check
      _
    $region3: #{dqn_q_func_forward.1} parent=1 // pred_check_branch
      %22 = sbr.rel (0) target = $region5
    $region4: #{dqn_q_func_forward.1} parent=1 // pred_region
      %s24 = ssub.s32 128, 128
      %25 = vsyncadd [#allocation3], %s24
      %s27 = sshll.u32 [#allocation2], 4
      %s28 = int_to_ptr.vmem [resolvable:$true] %s27
      %30 = dma.hbm_to_vmem [thread:$0]  %s0, 128, %s28, [#allocation3]
    $region5: #{dqn_q_func_forward.1} parent=1 // pred_fallthru
      _
    // Predicated region
    $region6: #{dqn_q_func_forward.1} parent=1 // pred_check
      _
    $region7: #{dqn_q_func_forward.1} parent=1 // pred_check_branch
      %32 = sbr.rel (0) target = $region9
    $region8: #{dqn_q_func_forward.1} parent=1 // pred_region
      %s34 = ssub.s32 128, 128
      %35 = vsyncadd [#allocation6], %s34
      %s37 = sshll.u32 [#allocation5], 4
      %s38 = int_to_ptr.vmem [resolvable:$true] %s37
      %40 = dma.hbm_to_vmem [thread:$0]  %s1, 128, %s38, [#allocation6]
    $region9: #{dqn_q_func_forward.1} parent=1 // pred_fallthru
      _
    // Predicated region
    $region10: #{dqn_q_func_forward.1} parent=1 // pred_check
      _
    $region11: #{dqn_q_func_forward.1} parent=1 // pred_check_branch
      %42 = sbr.rel (0) target = $region13
    $region12: #{dqn_q_func_forward.1} parent=1 // pred_region
      _
    $region13: #{dqn_q_func_forward.1} parent=1 // pred_fallthru
      _
    // Predicated region
    $region14: #{dqn_q_func_forward.1} parent=1 // pred_check
      _
    $region15: #{dqn_q_func_forward.1} parent=1 // pred_check_branch
      %44 = sbr.rel (0) target = $region17
    $region16: #{dqn_q_func_forward.1} parent=1 // pred_region
      _
    $region17: #{dqn_q_func_forward.1} parent=1 // pred_fallthru
      _
    // Predicated region
    $region18: #{dqn_q_func_forward.1} parent=1 // pred_check
      _
    $region19: #{dqn_q_func_forward.1} parent=1 // pred_check_branch
      %46 = sbr.rel (0) target = $region21
    $region20: #{dqn_q_func_forward.1} parent=1 // pred_region
      %s48 = ssub.s32 16, 16
      %49 = vsyncadd [#allocation6], %s48
      %s51 = sshll.u32 [#allocation7], 4
      %s52 = int_to_ptr.vmem [resolvable:$true] %s51
      %54 = dma.hbm_to_vmem [thread:$0]  %s4, 16, %s52, [#allocation6]
    $region21: #{dqn_q_func_forward.1} parent=1 // pred_fallthru
      _
    // Predicated region
    $region22: #{dqn_q_func_forward.1} parent=1 // pred_check
      _
    $region23: #{dqn_q_func_forward.1} parent=1 // pred_check_branch
      %56 = sbr.rel (0) target = $region25
    $region24: #{dqn_q_func_forward.1} parent=1 // pred_region
      %s58 = ssub.s32 4096, 4096
      %59 = vsyncadd [#allocation9], %s58
      %s60 = sshll.u32 [#allocation8], 4
      %s61 = int_to_ptr.vmem [resolvable:$true] %s60
      %66 = dma.hbm_to_vmem [thread:$0]  %s5, 4096, %s61, [#allocation9], 256, 256, 16
    $region25: #{dqn_q_func_forward.1} parent=1 // pred_fallthru
      _
    // Predicated region
    $region26: #{dqn_q_func_forward.1} parent=1 // pred_check
      _
    $region27: #{dqn_q_func_forward.1} parent=1 // pred_check_branch
      %68 = sbr.rel (0) target = $region29
    $region28: #{dqn_q_func_forward.1} parent=1 // pred_region
      _
    $region29: #{dqn_q_func_forward.1} parent=1 // pred_fallthru
      _
    // Predicated region
    $region30: #{dqn_q_func_forward.1} parent=1 // pred_check
      _
    $region31: #{dqn_q_func_forward.1} parent=1 // pred_check_branch
      %70 = sbr.rel (0) target = $region33
    $region32: #{dqn_q_func_forward.1} parent=1 // pred_region
      %s72 = ssub.s32 8192, 8192
      %73 = vsyncadd [#allocation9], %s72
      %s74 = sshll.u32 [#allocation10], 4
      %s75 = int_to_ptr.vmem [resolvable:$true] %s74
      %80 = dma.hbm_to_vmem [thread:$0]  %s7, 8192, %s75, [#allocation9], 128, 128, 8
    $region33: #{dqn_q_func_forward.1} parent=1 // pred_fallthru
      _
    // Predicated region
    $region34: #{dqn_q_func_forward.1} parent=1 // pred_check
      _
    $region35: #{dqn_q_func_forward.1} parent=1 // pred_check_branch
      %82 = sbr.rel (0) target = $region37
    $region36: #{dqn_q_func_forward.1} parent=1 // pred_region
      _
    $region37: #{dqn_q_func_forward.1} parent=1 // pred_fallthru
      _
    // Predicated region
    $region38: #{dqn_q_func_forward.1} parent=1 // pred_check
      _
    $region39: #{dqn_q_func_forward.1} parent=1 // pred_check_branch
      %84 = sbr.rel (0) target = $region41
    $region40: #{dqn_q_func_forward.1} parent=1 // pred_region
      %s86 = ssub.s32 2048, 2048
      %87 = vsyncadd [#allocation12], %s86
      %s88 = sshll.u32 [#allocation11], 4
      %s89 = int_to_ptr.vmem [resolvable:$true] %s88
      %94 = dma.hbm_to_vmem [thread:$0]  %s9, 2048, %s89, [#allocation12], 64, 64, 4
    $region41: #{dqn_q_func_forward.1} parent=1 // pred_fallthru
      _
    // Predicated region
    $region42: #{dqn_q_func_forward.1} parent=1 // pred_check
      _
    $region43: #{dqn_q_func_forward.1} parent=1 // pred_check_branch
      %96 = sbr.rel (0) target = $region45
    $region44: #{dqn_q_func_forward.1} parent=1 // pred_region
      %s98 = ssub.s32 16, 16
      %99 = vsyncadd [#allocation12], %s98
      %s101 = sshll.u32 [#allocation13], 4
      %s102 = int_to_ptr.vmem [resolvable:$true] %s101
      %104 = dma.hbm_to_vmem [thread:$0]  %s10, 16, %s102, [#allocation12]
    $region45: #{dqn_q_func_forward.1} parent=1 // pred_fallthru
      _
    // Predicated region
    $region46: #{dqn_q_func_forward.1} parent=1 // pred_check
      _
    $region47: #{dqn_q_func_forward.1} parent=1 // pred_check_branch
      %106 = sbr.rel (0) target = $region49
    $region48: #{dqn_q_func_forward.1} parent=1 // pred_region
      %107 = dma.done [#allocation3], 128
    $region49: #{dqn_q_func_forward.1} parent=1 // pred_fallthru
      _
    // Predicated region
    $region50: #{dqn_q_func_forward.1} parent=1 // pred_check
      _
    $region51: #{dqn_q_func_forward.1} parent=1 // pred_check_branch
      %109 = sbr.rel (0) target = $region53
    $region52: #{dqn_q_func_forward.1} parent=1 // pred_region
      %110 = dma.done [#allocation6], 128
    $region53: #{dqn_q_func_forward.1} parent=1 // pred_fallthru
      _
    // Predicated region
    $region54: #{dqn_q_func_forward.1} parent=1 // pred_check
      _
    $region55: #{dqn_q_func_forward.1} parent=1 // pred_check_branch
      %112 = sbr.rel (0) target = $region57
    $region56: #{dqn_q_func_forward.1} parent=1 // pred_region
      %113 = dma.done [#allocation6], 16
    $region57: #{dqn_q_func_forward.1} parent=1 // pred_fallthru
      _
    // Predicated region
    $region58: #{dqn_q_func_forward.1} parent=1 // pred_check
      _
    $region59: #{dqn_q_func_forward.1} parent=1 // pred_check_branch
      %115 = sbr.rel (0) target = $region61
    $region60: #{dqn_q_func_forward.1} parent=1 // pred_region
      %116 = dma.done [#allocation9], 4096
    $region61: #{dqn_q_func_forward.1} parent=1 // pred_fallthru
      _
    // Predicated region
    $region62: #{dqn_q_func_forward.1} parent=1 // pred_check
      _
    $region63: #{dqn_q_func_forward.1} parent=1 // pred_check_branch
      %118 = sbr.rel (0) target = $region65
    $region64: #{dqn_q_func_forward.1} parent=1 // pred_region
      %119 = dma.done [#allocation9], 8192
    $region65: #{dqn_q_func_forward.1} parent=1 // pred_fallthru
      _
    // Predicated region
    $region66: #{dqn_q_func_forward.1} parent=1 // pred_check
      _
    $region67: #{dqn_q_func_forward.1} parent=1 // pred_check_branch
      %121 = sbr.rel (0) target = $region69
    $region68: #{dqn_q_func_forward.1} parent=1 // pred_region
      %122 = dma.done [#allocation12], 2048
    $region69: #{dqn_q_func_forward.1} parent=1 // pred_fallthru
      _
    // Predicated region
    $region70: #{dqn_q_func_forward.1} parent=1 // pred_check
      _
    $region71: #{dqn_q_func_forward.1} parent=1 // pred_check_branch
      %124 = sbr.rel (0) target = $region73
    $region72: #{dqn_q_func_forward.1} parent=1 // pred_region
      %125 = dma.done [#allocation12], 16
    $region73: #{dqn_q_func_forward.1} parent=1 // pred_fallthru
      _
    %v127 = vld [vmem:[#allocation2] sm:$0xff]
    %v128 = vpack.c.bf16 %v127, %v127
    %v129 = vld [vmem:[%s2] sm:$0xf]
    %v130 = vld [vmem:[%s2 + $0x4] sm:$0xf]
    %v131 = vld [vmem:[%s2 + $0x8] sm:$0xf]
    %v132 = vld [vmem:[%s2 + $0xc] sm:$0xf]
    %v133 = vld [vmem:[#allocation5] sm:$0xff]
    %v134 = vpack.c.bf16 %v133, %v133
    %v135 = vld [vmem:[%s3] sm:$0xf]
    %v136 = vld [vmem:[%s3 + $0x4] sm:$0xf]
    %v139 = vunpack.c.l.b16 %v135
    %v140 = vunpack.c.l.b16 %v136
    %v141 = vpack.c.b16 %v140, %v139
    %vm143 = vcmask 130048
    %v145 = vsel %vm143, %v134, 0
    %147 = vmatprep.subr.bf16.mxu0 0
    %148 = vmatpush1.bf16.msra.mxu0 %v141
    %149 = vmatprep.subr.bf16.mxu0 0
    %150 = vmatpush1.bf16.msra.mxu0 0
    %151 = vmatprep.subr.bf16.mxu0 0
    %152 = vmatpush1.bf16.msra.mxu0 0
    %153 = vmatprep.subr.bf16.mxu0 0
    %154 = vmatpush1.bf16.msra.mxu0 0
    %155 = vmatprep.subr.bf16.mxu0 0
    %156 = vmatpush1.bf16.msra.mxu0 0
    %157 = vmatprep.subr.bf16.mxu0 0
    %158 = vmatpush1.bf16.msra.mxu0 0
    %159 = vmatprep.subr.bf16.mxu0 0
    %160 = vmatpush1.bf16.msra.mxu0 0
    %161 = vmatprep.subr.bf16.mxu0 0
    %162 = vmatpush1.bf16.msra.mxu0 0
    %163 = vmatprep.subr.bf16.mxu0 0
    %164 = vmatpush1.bf16.msra.mxu0 0
    %165 = vmatprep.subr.bf16.mxu0 0
    %166 = vmatpush1.bf16.msra.mxu0 0
    %167 = vmatprep.subr.bf16.mxu0 0
    %168 = vmatpush1.bf16.msra.mxu0 0
    %169 = vmatprep.subr.bf16.mxu0 0
    %170 = vmatpush1.bf16.msra.mxu0 0
    %171 = vmatprep.subr.bf16.mxu0 0
    %172 = vmatpush1.bf16.msra.mxu0 0
    %173 = vmatprep.subr.bf16.mxu0 0
    %174 = vmatpush1.bf16.msra.mxu0 0
    %175 = vmatprep.subr.bf16.mxu0 0
    %176 = vmatpush1.bf16.msra.mxu0 0
    %177 = vmatprep.subr.bf16.mxu0 0
    %178 = vmatpush1.bf16.msra.mxu0 0
    %179 = vmatprep.mubr.bf16.mxu0 0
    %180 = vmatmul.mubr.bf16.gmra.mrb[0].mxu0 %v145
    %v181 = vpop.f32.mrb[0].mxu0
    %v182 = vadd.f32 0.0, %v181
    %v183 = vpop.f32.mrb[0].mxu0
    %v184 = vpop.f32.mrb[0].mxu0
    %v185 = vpop.f32.mrb[0].mxu0
    %186 = vdwg.mxu0
    %v191 = vunpack.c.l.b16 %v129
    %v192 = vunpack.c.l.b16 %v130
    %v193 = vunpack.c.l.b16 %v131
    %v194 = vunpack.c.l.b16 %v132
    %v195 = vpack.c.b16 %v192, %v191
    %v196 = vpack.c.b16 %v194, %v193
    %vm199 = vcmask 261120
    %v201 = vsel %vm199, %v128, 0
    %203 = vmatprep.subr.bf16.mxu0 0
    %204 = vmatpush1.bf16.msra.mxu0 %v195
    %205 = vmatprep.subr.bf16.mxu0 0
    %206 = vmatpush1.bf16.msra.mxu0 %v196
    %207 = vmatprep.subr.bf16.mxu0 0
    %208 = vmatpush1.bf16.msra.mxu0 0
    %209 = vmatprep.subr.bf16.mxu0 0
    %210 = vmatpush1.bf16.msra.mxu0 0
    %211 = vmatprep.subr.bf16.mxu0 0
    %212 = vmatpush1.bf16.msra.mxu0 0
    %213 = vmatprep.subr.bf16.mxu0 0
    %214 = vmatpush1.bf16.msra.mxu0 0
    %215 = vmatprep.subr.bf16.mxu0 0
    %216 = vmatpush1.bf16.msra.mxu0 0
    %217 = vmatprep.subr.bf16.mxu0 0
    %218 = vmatpush1.bf16.msra.mxu0 0
    %219 = vmatprep.subr.bf16.mxu0 0
    %220 = vmatpush1.bf16.msra.mxu0 0
    %221 = vmatprep.subr.bf16.mxu0 0
    %222 = vmatpush1.bf16.msra.mxu0 0
    %223 = vmatprep.subr.bf16.mxu0 0
    %224 = vmatpush1.bf16.msra.mxu0 0
    %225 = vmatprep.subr.bf16.mxu0 0
    %226 = vmatpush1.bf16.msra.mxu0 0
    %227 = vmatprep.subr.bf16.mxu0 0
    %228 = vmatpush1.bf16.msra.mxu0 0
    %229 = vmatprep.subr.bf16.mxu0 0
    %230 = vmatpush1.bf16.msra.mxu0 0
    %231 = vmatprep.subr.bf16.mxu0 0
    %232 = vmatpush1.bf16.msra.mxu0 0
    %233 = vmatprep.subr.bf16.mxu0 0
    %234 = vmatpush1.bf16.msra.mxu0 0
    %235 = vmatprep.mubr.bf16.mxu0 0
    %236 = vmatmul.mubr.bf16.gmra.mrb[0].mxu0 %v201
    %v237 = vpop.f32.mrb[0].mxu0
    %v238 = vadd.f32 %v182, %v237
    %v239 = vpop.f32.mrb[0].mxu0
    %v240 = vpop.f32.mrb[0].mxu0
    %v241 = vpop.f32.mrb[0].mxu0
    %242 = vdwg.mxu0
    %v243 = vld [vmem:[#allocation7] sm:$0x1]
    %v245 = vlaneseq
    %v246 = vshrl.u32 %v245, 7
    %v247 = vsub.s32 0, %v246
    %v248 = vrot.slane %v243, %v247
    %v250 = vadd.f32 %v238, %v248
    %vm251 = vcmp.gt.f32.partialorder %v250, 0.0
    %v252 = vmul.f32 %v250, 0.01
    %v253 = vsel %vm251, %v250, %v252
    %v254 = vpack.c.bf16 %v253, %v253
    %v255 = vld [vmem:[#allocation8] sm:$0xff]
    %v256 = vld [vmem:[#allocation8 + $0x8] sm:$0xff]
    %v257 = vld [vmem:[#allocation8 + $0x10] sm:$0xff]
    %v258 = vld [vmem:[#allocation8 + $0x18] sm:$0xff]
    %v259 = vld [vmem:[#allocation8 + $0x20] sm:$0xff]
    %v260 = vld [vmem:[#allocation8 + $0x28] sm:$0xff]
    %v261 = vld [vmem:[#allocation8 + $0x30] sm:$0xff]
    %v262 = vld [vmem:[#allocation8 + $0x38] sm:$0xff]
    %v263 = vld [vmem:[#allocation8 + $0x40] sm:$0xff]
    %v264 = vld [vmem:[#allocation8 + $0x48] sm:$0xff]
    %v265 = vld [vmem:[#allocation8 + $0x50] sm:$0xff]
    %v266 = vld [vmem:[#allocation8 + $0x58] sm:$0xff]
    %v267 = vld [vmem:[#allocation8 + $0x60] sm:$0xff]
    %v268 = vld [vmem:[#allocation8 + $0x68] sm:$0xff]
    %v269 = vld [vmem:[#allocation8 + $0x70] sm:$0xff]
    %v270 = vld [vmem:[#allocation8 + $0x78] sm:$0xff]
    %v271 = vld [vmem:[#allocation8 + $0x80] sm:$0xff]
    %v272 = vld [vmem:[#allocation8 + $0x88] sm:$0xff]
    %v273 = vld [vmem:[#allocation8 + $0x90] sm:$0xff]
    %v274 = vld [vmem:[#allocation8 + $0x98] sm:$0xff]
    %v275 = vld [vmem:[#allocation8 + $0xa0] sm:$0xff]
    %v276 = vld [vmem:[#allocation8 + $0xa8] sm:$0xff]
    %v277 = vld [vmem:[#allocation8 + $0xb0] sm:$0xff]
    %v278 = vld [vmem:[#allocation8 + $0xb8] sm:$0xff]
    %v279 = vld [vmem:[#allocation8 + $0xc0] sm:$0xff]
    %v280 = vld [vmem:[#allocation8 + $0xc8] sm:$0xff]
    %v281 = vld [vmem:[#allocation8 + $0xd0] sm:$0xff]
    %v282 = vld [vmem:[#allocation8 + $0xd8] sm:$0xff]
    %v283 = vld [vmem:[#allocation8 + $0xe0] sm:$0xff]
    %v284 = vld [vmem:[#allocation8 + $0xe8] sm:$0xff]
    %v285 = vld [vmem:[#allocation8 + $0xf0] sm:$0xff]
    %v286 = vld [vmem:[#allocation8 + $0xf8] sm:$0xff]
    %v287 = vld [vmem:[%s6] sm:$0xf]
    %v289 = vlaneseq
    %v290 = vshrl.u32 %v289, 7
    %v291 = vsub.s32 0, %v290
    %v292 = vrot.slane %v287, %v291
    %v293 = vlaneseq
    %v294 = vshrl.u32 %v293, 7
    %v295 = vsub.s32 1, %v294
    %v296 = vrot.slane %v287, %v295
    %v297 = vlaneseq
    %v298 = vshrl.u32 %v297, 7
    %v299 = vsub.s32 2, %v298
    %v300 = vrot.slane %v287, %v299
    %v301 = vlaneseq
    %v302 = vshrl.u32 %v301, 7
    %v303 = vsub.s32 3, %v302
    %v304 = vrot.slane %v287, %v303
    %v341 = vunpack.c.l.b16 %v255
    %v342 = vunpack.c.h.b16 %v255
    %v343 = vunpack.c.l.b16 %v256
    %v344 = vunpack.c.h.b16 %v256
    %v345 = vunpack.c.l.b16 %v257
    %v346 = vunpack.c.h.b16 %v257
    %v347 = vunpack.c.l.b16 %v258
    %v348 = vunpack.c.h.b16 %v258
    %v349 = vunpack.c.l.b16 %v259
    %v350 = vunpack.c.h.b16 %v259
    %v351 = vunpack.c.l.b16 %v260
    %v352 = vunpack.c.h.b16 %v260
    %v353 = vunpack.c.l.b16 %v261
    %v354 = vunpack.c.h.b16 %v261
    %v355 = vunpack.c.l.b16 %v262
    %v356 = vunpack.c.h.b16 %v262
    %v357 = vunpack.c.l.b16 %v263
    %v358 = vunpack.c.h.b16 %v263
    %v359 = vunpack.c.l.b16 %v264
    %v360 = vunpack.c.h.b16 %v264
    %v361 = vunpack.c.l.b16 %v265
    %v362 = vunpack.c.h.b16 %v265
    %v363 = vunpack.c.l.b16 %v266
    %v364 = vunpack.c.h.b16 %v266
    %v365 = vunpack.c.l.b16 %v267
    %v366 = vunpack.c.h.b16 %v267
    %v367 = vunpack.c.l.b16 %v268
    %v368 = vunpack.c.h.b16 %v268
    %v369 = vunpack.c.l.b16 %v269
    %v370 = vunpack.c.h.b16 %v269
    %v371 = vunpack.c.l.b16 %v270
    %v372 = vunpack.c.h.b16 %v270
    %v373 = vunpack.c.l.b16 %v271
    %v374 = vunpack.c.h.b16 %v271
    %v375 = vunpack.c.l.b16 %v272
    %v376 = vunpack.c.h.b16 %v272
    %v377 = vunpack.c.l.b16 %v273
    %v378 = vunpack.c.h.b16 %v273
    %v379 = vunpack.c.l.b16 %v274
    %v380 = vunpack.c.h.b16 %v274
    %v381 = vunpack.c.l.b16 %v275
    %v382 = vunpack.c.h.b16 %v275
    %v383 = vunpack.c.l.b16 %v276
    %v384 = vunpack.c.h.b16 %v276
    %v385 = vunpack.c.l.b16 %v277
    %v386 = vunpack.c.h.b16 %v277
    %v387 = vunpack.c.l.b16 %v278
    %v388 = vunpack.c.h.b16 %v278
    %v389 = vunpack.c.l.b16 %v279
    %v390 = vunpack.c.h.b16 %v279
    %v391 = vunpack.c.l.b16 %v280
    %v392 = vunpack.c.h.b16 %v280
    %v393 = vunpack.c.l.b16 %v281
    %v394 = vunpack.c.h.b16 %v281
    %v395 = vunpack.c.l.b16 %v282
    %v396 = vunpack.c.h.b16 %v282
    %v397 = vunpack.c.l.b16 %v283
    %v398 = vunpack.c.h.b16 %v283
    %v399 = vunpack.c.l.b16 %v284
    %v400 = vunpack.c.h.b16 %v284
    %v401 = vunpack.c.l.b16 %v285
    %v402 = vunpack.c.h.b16 %v285
    %v403 = vunpack.c.l.b16 %v286
    %v404 = vunpack.c.h.b16 %v286
    %v405 = vpack.c.b16 %v345, %v341
    %v406 = vpack.c.b16 %v346, %v342
    %v407 = vpack.c.b16 %v347, %v343
    %v408 = vpack.c.b16 %v348, %v344
    %v409 = vpack.c.b16 %v353, %v349
    %v410 = vpack.c.b16 %v354, %v350
    %v411 = vpack.c.b16 %v355, %v351
    %v412 = vpack.c.b16 %v356, %v352
    %v413 = vpack.c.b16 %v361, %v357
    %v414 = vpack.c.b16 %v362, %v358
    %v415 = vpack.c.b16 %v363, %v359
    %v416 = vpack.c.b16 %v364, %v360
    %v417 = vpack.c.b16 %v369, %v365
    %v418 = vpack.c.b16 %v370, %v366
    %v419 = vpack.c.b16 %v371, %v367
    %v420 = vpack.c.b16 %v372, %v368
    %v421 = vpack.c.b16 %v377, %v373
    %v422 = vpack.c.b16 %v378, %v374
    %v423 = vpack.c.b16 %v379, %v375
    %v424 = vpack.c.b16 %v380, %v376
    %v425 = vpack.c.b16 %v385, %v381
    %v426 = vpack.c.b16 %v386, %v382
    %v427 = vpack.c.b16 %v387, %v383
    %v428 = vpack.c.b16 %v388, %v384
    %v429 = vpack.c.b16 %v393, %v389
    %v430 = vpack.c.b16 %v394, %v390
    %v431 = vpack.c.b16 %v395, %v391
    %v432 = vpack.c.b16 %v396, %v392
    %v433 = vpack.c.b16 %v401, %v397
    %v434 = vpack.c.b16 %v402, %v398
    %v435 = vpack.c.b16 %v403, %v399
    %v436 = vpack.c.b16 %v404, %v400
    %469 = vmatprep.subr.bf16.mxu0 %v406
    %470 = vmatpush1.bf16.msra.mxu0 %v405
    %471 = vmatprep.subr.bf16.mxu0 %v410
    %472 = vmatpush1.bf16.msra.mxu0 %v409
    %473 = vmatprep.subr.bf16.mxu0 %v414
    %474 = vmatpush1.bf16.msra.mxu0 %v413
    %475 = vmatprep.subr.bf16.mxu0 %v418
    %476 = vmatpush1.bf16.msra.mxu0 %v417
    %477 = vmatprep.subr.bf16.mxu0 %v422
    %478 = vmatpush1.bf16.msra.mxu0 %v421
    %479 = vmatprep.subr.bf16.mxu0 %v426
    %480 = vmatpush1.bf16.msra.mxu0 %v425
    %481 = vmatprep.subr.bf16.mxu0 %v430
    %482 = vmatpush1.bf16.msra.mxu0 %v429
    %483 = vmatprep.subr.bf16.mxu0 %v434
    %484 = vmatpush1.bf16.msra.mxu0 %v433
    %485 = vmatprep.subr.bf16.mxu0 0
    %486 = vmatpush1.bf16.msra.mxu0 0
    %487 = vmatprep.subr.bf16.mxu0 0
    %488 = vmatpush1.bf16.msra.mxu0 0
    %489 = vmatprep.subr.bf16.mxu0 0
    %490 = vmatpush1.bf16.msra.mxu0 0
    %491 = vmatprep.subr.bf16.mxu0 0
    %492 = vmatpush1.bf16.msra.mxu0 0
    %493 = vmatprep.subr.bf16.mxu0 0
    %494 = vmatpush1.bf16.msra.mxu0 0
    %495 = vmatprep.subr.bf16.mxu0 0
    %496 = vmatpush1.bf16.msra.mxu0 0
    %497 = vmatprep.subr.bf16.mxu0 0
    %498 = vmatpush1.bf16.msra.mxu0 0
    %499 = vmatprep.subr.bf16.mxu0 0
    %500 = vmatpush1.bf16.msra.mxu0 0
    %501 = vmatprep.mubr.bf16.mxu0 0
    %502 = vmatmul.mubr.bf16.gmra.mrb[0].mxu0 %v254
    %v503 = vpop.f32.mrb[0].mxu0
    %v504 = vadd.f32 %v292, %v503
    %v505 = vpop.f32.mrb[0].mxu0
    %v506 = vadd.f32 %v296, %v505
    %v507 = vpop.f32.mrb[0].mxu0
    %v508 = vpop.f32.mrb[0].mxu0
    %509 = vdwg.mxu0
    %510 = vmatprep.subr.bf16.mxu0 %v408
    %511 = vmatpush1.bf16.msra.mxu0 %v407
    %512 = vmatprep.subr.bf16.mxu0 %v412
    %513 = vmatpush1.bf16.msra.mxu0 %v411
    %514 = vmatprep.subr.bf16.mxu0 %v416
    %515 = vmatpush1.bf16.msra.mxu0 %v415
    %516 = vmatprep.subr.bf16.mxu0 %v420
    %517 = vmatpush1.bf16.msra.mxu0 %v419
    %518 = vmatprep.subr.bf16.mxu0 %v424
    %519 = vmatpush1.bf16.msra.mxu0 %v423
    %520 = vmatprep.subr.bf16.mxu0 %v428
    %521 = vmatpush1.bf16.msra.mxu0 %v427
    %522 = vmatprep.subr.bf16.mxu0 %v432
    %523 = vmatpush1.bf16.msra.mxu0 %v431
    %524 = vmatprep.subr.bf16.mxu0 %v436
    %525 = vmatpush1.bf16.msra.mxu0 %v435
    %526 = vmatprep.subr.bf16.mxu0 0
    %527 = vmatpush1.bf16.msra.mxu0 0
    %528 = vmatprep.subr.bf16.mxu0 0
    %529 = vmatpush1.bf16.msra.mxu0 0
    %530 = vmatprep.subr.bf16.mxu0 0
    %531 = vmatpush1.bf16.msra.mxu0 0
    %532 = vmatprep.subr.bf16.mxu0 0
    %533 = vmatpush1.bf16.msra.mxu0 0
    %534 = vmatprep.subr.bf16.mxu0 0
    %535 = vmatpush1.bf16.msra.mxu0 0
    %536 = vmatprep.subr.bf16.mxu0 0
    %537 = vmatpush1.bf16.msra.mxu0 0
    %538 = vmatprep.subr.bf16.mxu0 0
    %539 = vmatpush1.bf16.msra.mxu0 0
    %540 = vmatprep.subr.bf16.mxu0 0
    %541 = vmatpush1.bf16.msra.mxu0 0
    %542 = vmatprep.mubr.bf16.mxu0 0
    %543 = vmatmul.mubr.bf16.gmra.mrb[0].mxu0 %v254
    %v544 = vpop.f32.mrb[0].mxu0
    %v545 = vadd.f32 %v300, %v544
    %v546 = vpop.f32.mrb[0].mxu0
    %v547 = vadd.f32 %v304, %v546
    %v548 = vpop.f32.mrb[0].mxu0
    %v549 = vpop.f32.mrb[0].mxu0
    %550 = vdwg.mxu0
    %vm551 = vcmp.gt.f32.partialorder %v504, 0.0
    %vm552 = vcmp.gt.f32.partialorder %v506, 0.0
    %vm553 = vcmp.gt.f32.partialorder %v545, 0.0
    %vm554 = vcmp.gt.f32.partialorder %v547, 0.0
    %v555 = vmul.f32 %v504, 0.01
    %v556 = vmul.f32 %v506, 0.01
    %v557 = vmul.f32 %v545, 0.01
    %v558 = vmul.f32 %v547, 0.01
    %v559 = vsel %vm551, %v504, %v555
    %v560 = vsel %vm552, %v506, %v556
    %v561 = vsel %vm553, %v545, %v557
    %v562 = vsel %vm554, %v547, %v558
    %v563 = vpack.c.bf16 %v559, %v559
    %v564 = vpack.c.bf16 %v560, %v560
    %v565 = vpack.c.bf16 %v561, %v561
    %v566 = vpack.c.bf16 %v562, %v562
    %v567 = vld [vmem:[#allocation10] sm:$0xff]
    %v568 = vld [vmem:[#allocation10 + $0x8] sm:$0xff]
    %v569 = vld [vmem:[#allocation10 + $0x10] sm:$0xff]
    %v570 = vld [vmem:[#allocation10 + $0x18] sm:$0xff]
    %v571 = vld [vmem:[#allocation10 + $0x20] sm:$0xff]
    %v572 = vld [vmem:[#allocation10 + $0x28] sm:$0xff]
    %v573 = vld [vmem:[#allocation10 + $0x30] sm:$0xff]
    %v574 = vld [vmem:[#allocation10 + $0x38] sm:$0xff]
    %v575 = vld [vmem:[#allocation10 + $0x40] sm:$0xff]
    %v576 = vld [vmem:[#allocation10 + $0x48] sm:$0xff]
    %v577 = vld [vmem:[#allocation10 + $0x50] sm:$0xff]
    %v578 = vld [vmem:[#allocation10 + $0x58] sm:$0xff]
    %v579 = vld [vmem:[#allocation10 + $0x60] sm:$0xff]
    %v580 = vld [vmem:[#allocation10 + $0x68] sm:$0xff]
    %v581 = vld [vmem:[#allocation10 + $0x70] sm:$0xff]
    %v582 = vld [vmem:[#allocation10 + $0x78] sm:$0xff]
    %v583 = vld [vmem:[#allocation10 + $0x80] sm:$0xff]
    %v584 = vld [vmem:[#allocation10 + $0x88] sm:$0xff]
    %v585 = vld [vmem:[#allocation10 + $0x90] sm:$0xff]
    %v586 = vld [vmem:[#allocation10 + $0x98] sm:$0xff]
    %v587 = vld [vmem:[#allocation10 + $0xa0] sm:$0xff]
    %v588 = vld [vmem:[#allocation10 + $0xa8] sm:$0xff]
    %v589 = vld [vmem:[#allocation10 + $0xb0] sm:$0xff]
    %v590 = vld [vmem:[#allocation10 + $0xb8] sm:$0xff]
    %v591 = vld [vmem:[#allocation10 + $0xc0] sm:$0xff]
    %v592 = vld [vmem:[#allocation10 + $0xc8] sm:$0xff]
    %v593 = vld [vmem:[#allocation10 + $0xd0] sm:$0xff]
    %v594 = vld [vmem:[#allocation10 + $0xd8] sm:$0xff]
    %v595 = vld [vmem:[#allocation10 + $0xe0] sm:$0xff]
    %v596 = vld [vmem:[#allocation10 + $0xe8] sm:$0xff]
    %v597 = vld [vmem:[#allocation10 + $0xf0] sm:$0xff]
    %v598 = vld [vmem:[#allocation10 + $0xf8] sm:$0xff]
    %v599 = vld [vmem:[#allocation10 + $0x100] sm:$0xff]
    %v600 = vld [vmem:[#allocation10 + $0x108] sm:$0xff]
    %v601 = vld [vmem:[#allocation10 + $0x110] sm:$0xff]
    %v602 = vld [vmem:[#allocation10 + $0x118] sm:$0xff]
    %v603 = vld [vmem:[#allocation10 + $0x120] sm:$0xff]
    %v604 = vld [vmem:[#allocation10 + $0x128] sm:$0xff]
    %v605 = vld [vmem:[#allocation10 + $0x130] sm:$0xff]
    %v606 = vld [vmem:[#allocation10 + $0x138] sm:$0xff]
    %v607 = vld [vmem:[#allocation10 + $0x140] sm:$0xff]
    %v608 = vld [vmem:[#allocation10 + $0x148] sm:$0xff]
    %v609 = vld [vmem:[#allocation10 + $0x150] sm:$0xff]
    %v610 = vld [vmem:[#allocation10 + $0x158] sm:$0xff]
    %v611 = vld [vmem:[#allocation10 + $0x160] sm:$0xff]
    %v612 = vld [vmem:[#allocation10 + $0x168] sm:$0xff]
    %v613 = vld [vmem:[#allocation10 + $0x170] sm:$0xff]
    %v614 = vld [vmem:[#allocation10 + $0x178] sm:$0xff]
    %v615 = vld [vmem:[#allocation10 + $0x180] sm:$0xff]
    %v616 = vld [vmem:[#allocation10 + $0x188] sm:$0xff]
    %v617 = vld [vmem:[#allocation10 + $0x190] sm:$0xff]
    %v618 = vld [vmem:[#allocation10 + $0x198] sm:$0xff]
    %v619 = vld [vmem:[#allocation10 + $0x1a0] sm:$0xff]
    %v620 = vld [vmem:[#allocation10 + $0x1a8] sm:$0xff]
    %v621 = vld [vmem:[#allocation10 + $0x1b0] sm:$0xff]
    %v622 = vld [vmem:[#allocation10 + $0x1b8] sm:$0xff]
    %v623 = vld [vmem:[#allocation10 + $0x1c0] sm:$0xff]
    %v624 = vld [vmem:[#allocation10 + $0x1c8] sm:$0xff]
    %v625 = vld [vmem:[#allocation10 + $0x1d0] sm:$0xff]
    %v626 = vld [vmem:[#allocation10 + $0x1d8] sm:$0xff]
    %v627 = vld [vmem:[#allocation10 + $0x1e0] sm:$0xff]
    %v628 = vld [vmem:[#allocation10 + $0x1e8] sm:$0xff]
    %v629 = vld [vmem:[#allocation10 + $0x1f0] sm:$0xff]
    %v630 = vld [vmem:[#allocation10 + $0x1f8] sm:$0xff]
    %v631 = vld [vmem:[%s8] sm:$0x3]
    %v633 = vlaneseq
    %v634 = vshrl.u32 %v633, 7
    %v635 = vsub.s32 0, %v634
    %v636 = vrot.slane %v631, %v635
    %v637 = vlaneseq
    %v638 = vshrl.u32 %v637, 7
    %v639 = vsub.s32 1, %v638
    %v640 = vrot.slane %v631, %v639
    %v707 = vunpack.c.l.b16 %v567
    %v708 = vunpack.c.h.b16 %v567
    %v709 = vunpack.c.l.b16 %v568
    %v710 = vunpack.c.h.b16 %v568
    %v711 = vunpack.c.l.b16 %v569
    %v712 = vunpack.c.h.b16 %v569
    %v713 = vunpack.c.l.b16 %v570
    %v714 = vunpack.c.h.b16 %v570
    %v715 = vunpack.c.l.b16 %v571
    %v716 = vunpack.c.h.b16 %v571
    %v717 = vunpack.c.l.b16 %v572
    %v718 = vunpack.c.h.b16 %v572
    %v719 = vunpack.c.l.b16 %v573
    %v720 = vunpack.c.h.b16 %v573
    %v721 = vunpack.c.l.b16 %v574
    %v722 = vunpack.c.h.b16 %v574
    %v723 = vunpack.c.l.b16 %v575
    %v724 = vunpack.c.h.b16 %v575
    %v725 = vunpack.c.l.b16 %v576
    %v726 = vunpack.c.h.b16 %v576
    %v727 = vunpack.c.l.b16 %v577
    %v728 = vunpack.c.h.b16 %v577
    %v729 = vunpack.c.l.b16 %v578
    %v730 = vunpack.c.h.b16 %v578
    %v731 = vunpack.c.l.b16 %v579
    %v732 = vunpack.c.h.b16 %v579
    %v733 = vunpack.c.l.b16 %v580
    %v734 = vunpack.c.h.b16 %v580
    %v735 = vunpack.c.l.b16 %v581
    %v736 = vunpack.c.h.b16 %v581
    %v737 = vunpack.c.l.b16 %v582
    %v738 = vunpack.c.h.b16 %v582
    %v739 = vunpack.c.l.b16 %v583
    %v740 = vunpack.c.h.b16 %v583
    %v741 = vunpack.c.l.b16 %v584
    %v742 = vunpack.c.h.b16 %v584
    %v743 = vunpack.c.l.b16 %v585
    %v744 = vunpack.c.h.b16 %v585
    %v745 = vunpack.c.l.b16 %v586
    %v746 = vunpack.c.h.b16 %v586
    %v747 = vunpack.c.l.b16 %v587
    %v748 = vunpack.c.h.b16 %v587
    %v749 = vunpack.c.l.b16 %v588
    %v750 = vunpack.c.h.b16 %v588
    %v751 = vunpack.c.l.b16 %v589
    %v752 = vunpack.c.h.b16 %v589
    %v753 = vunpack.c.l.b16 %v590
    %v754 = vunpack.c.h.b16 %v590
    %v755 = vunpack.c.l.b16 %v591
    %v756 = vunpack.c.h.b16 %v591
    %v757 = vunpack.c.l.b16 %v592
    %v758 = vunpack.c.h.b16 %v592
    %v759 = vunpack.c.l.b16 %v593
    %v760 = vunpack.c.h.b16 %v593
    %v761 = vunpack.c.l.b16 %v594
    %v762 = vunpack.c.h.b16 %v594
    %v763 = vunpack.c.l.b16 %v595
    %v764 = vunpack.c.h.b16 %v595
    %v765 = vunpack.c.l.b16 %v596
    %v766 = vunpack.c.h.b16 %v596
    %v767 = vunpack.c.l.b16 %v597
    %v768 = vunpack.c.h.b16 %v597
    %v769 = vunpack.c.l.b16 %v598
    %v770 = vunpack.c.h.b16 %v598
    %v771 = vunpack.c.l.b16 %v599
    %v772 = vunpack.c.h.b16 %v599
    %v773 = vunpack.c.l.b16 %v600
    %v774 = vunpack.c.h.b16 %v600
    %v775 = vunpack.c.l.b16 %v601
    %v776 = vunpack.c.h.b16 %v601
    %v777 = vunpack.c.l.b16 %v602
    %v778 = vunpack.c.h.b16 %v602
    %v779 = vunpack.c.l.b16 %v603
    %v780 = vunpack.c.h.b16 %v603
    %v781 = vunpack.c.l.b16 %v604
    %v782 = vunpack.c.h.b16 %v604
    %v783 = vunpack.c.l.b16 %v605
    %v784 = vunpack.c.h.b16 %v605
    %v785 = vunpack.c.l.b16 %v606
    %v786 = vunpack.c.h.b16 %v606
    %v787 = vunpack.c.l.b16 %v607
    %v788 = vunpack.c.h.b16 %v607
    %v789 = vunpack.c.l.b16 %v608
    %v790 = vunpack.c.h.b16 %v608
    %v791 = vunpack.c.l.b16 %v609
    %v792 = vunpack.c.h.b16 %v609
    %v793 = vunpack.c.l.b16 %v610
    %v794 = vunpack.c.h.b16 %v610
    %v795 = vunpack.c.l.b16 %v611
    %v796 = vunpack.c.h.b16 %v611
    %v797 = vunpack.c.l.b16 %v612
    %v798 = vunpack.c.h.b16 %v612
    %v799 = vunpack.c.l.b16 %v613
    %v800 = vunpack.c.h.b16 %v613
    %v801 = vunpack.c.l.b16 %v614
    %v802 = vunpack.c.h.b16 %v614
    %v803 = vunpack.c.l.b16 %v615
    %v804 = vunpack.c.h.b16 %v615
    %v805 = vunpack.c.l.b16 %v616
    %v806 = vunpack.c.h.b16 %v616
    %v807 = vunpack.c.l.b16 %v617
    %v808 = vunpack.c.h.b16 %v617
    %v809 = vunpack.c.l.b16 %v618
    %v810 = vunpack.c.h.b16 %v618
    %v811 = vunpack.c.l.b16 %v619
    %v812 = vunpack.c.h.b16 %v619
    %v813 = vunpack.c.l.b16 %v620
    %v814 = vunpack.c.h.b16 %v620
    %v815 = vunpack.c.l.b16 %v621
    %v816 = vunpack.c.h.b16 %v621
    %v817 = vunpack.c.l.b16 %v622
    %v818 = vunpack.c.h.b16 %v622
    %v819 = vunpack.c.l.b16 %v623
    %v820 = vunpack.c.h.b16 %v623
    %v821 = vunpack.c.l.b16 %v624
    %v822 = vunpack.c.h.b16 %v624
    %v823 = vunpack.c.l.b16 %v625
    %v824 = vunpack.c.h.b16 %v625
    %v825 = vunpack.c.l.b16 %v626
    %v826 = vunpack.c.h.b16 %v626
    %v827 = vunpack.c.l.b16 %v627
    %v828 = vunpack.c.h.b16 %v627
    %v829 = vunpack.c.l.b16 %v628
    %v830 = vunpack.c.h.b16 %v628
    %v831 = vunpack.c.l.b16 %v629
    %v832 = vunpack.c.h.b16 %v629
    %v833 = vunpack.c.l.b16 %v630
    %v834 = vunpack.c.h.b16 %v630
    %v835 = vpack.c.b16 %v709, %v707
    %v836 = vpack.c.b16 %v710, %v708
    %v837 = vpack.c.b16 %v713, %v711
    %v838 = vpack.c.b16 %v714, %v712
    %v839 = vpack.c.b16 %v717, %v715
    %v840 = vpack.c.b16 %v718, %v716
    %v841 = vpack.c.b16 %v721, %v719
    %v842 = vpack.c.b16 %v722, %v720
    %v843 = vpack.c.b16 %v725, %v723
    %v844 = vpack.c.b16 %v726, %v724
    %v845 = vpack.c.b16 %v729, %v727
    %v846 = vpack.c.b16 %v730, %v728
    %v847 = vpack.c.b16 %v733, %v731
    %v848 = vpack.c.b16 %v734, %v732
    %v849 = vpack.c.b16 %v737, %v735
    %v850 = vpack.c.b16 %v738, %v736
    %v851 = vpack.c.b16 %v741, %v739
    %v852 = vpack.c.b16 %v742, %v740
    %v853 = vpack.c.b16 %v745, %v743
    %v854 = vpack.c.b16 %v746, %v744
    %v855 = vpack.c.b16 %v749, %v747
    %v856 = vpack.c.b16 %v750, %v748
    %v857 = vpack.c.b16 %v753, %v751
    %v858 = vpack.c.b16 %v754, %v752
    %v859 = vpack.c.b16 %v757, %v755
    %v860 = vpack.c.b16 %v758, %v756
    %v861 = vpack.c.b16 %v761, %v759
    %v862 = vpack.c.b16 %v762, %v760
    %v863 = vpack.c.b16 %v765, %v763
    %v864 = vpack.c.b16 %v766, %v764
    %v865 = vpack.c.b16 %v769, %v767
    %v866 = vpack.c.b16 %v770, %v768
    %v867 = vpack.c.b16 %v773, %v771
    %v868 = vpack.c.b16 %v774, %v772
    %v869 = vpack.c.b16 %v777, %v775
    %v870 = vpack.c.b16 %v778, %v776
    %v871 = vpack.c.b16 %v781, %v779
    %v872 = vpack.c.b16 %v782, %v780
    %v873 = vpack.c.b16 %v785, %v783
    %v874 = vpack.c.b16 %v786, %v784
    %v875 = vpack.c.b16 %v789, %v787
    %v876 = vpack.c.b16 %v790, %v788
    %v877 = vpack.c.b16 %v793, %v791
    %v878 = vpack.c.b16 %v794, %v792
    %v879 = vpack.c.b16 %v797, %v795
    %v880 = vpack.c.b16 %v798, %v796
    %v881 = vpack.c.b16 %v801, %v799
    %v882 = vpack.c.b16 %v802, %v800
    %v883 = vpack.c.b16 %v805, %v803
    %v884 = vpack.c.b16 %v806, %v804
    %v885 = vpack.c.b16 %v809, %v807
    %v886 = vpack.c.b16 %v810, %v808
    %v887 = vpack.c.b16 %v813, %v811
    %v888 = vpack.c.b16 %v814, %v812
    %v889 = vpack.c.b16 %v817, %v815
    %v890 = vpack.c.b16 %v818, %v816
    %v891 = vpack.c.b16 %v821, %v819
    %v892 = vpack.c.b16 %v822, %v820
    %v893 = vpack.c.b16 %v825, %v823
    %v894 = vpack.c.b16 %v826, %v824
    %v895 = vpack.c.b16 %v829, %v827
    %v896 = vpack.c.b16 %v830, %v828
    %v897 = vpack.c.b16 %v833, %v831
    %v898 = vpack.c.b16 %v834, %v832
    %963 = vmatprep.subr.bf16.mxu0 %v836
    %964 = vmatpush1.bf16.msra.mxu0 %v835
    %965 = vmatprep.subr.bf16.mxu0 %v838
    %966 = vmatpush1.bf16.msra.mxu0 %v837
    %967 = vmatprep.subr.bf16.mxu0 %v840
    %968 = vmatpush1.bf16.msra.mxu0 %v839
    %969 = vmatprep.subr.bf16.mxu0 %v842
    %970 = vmatpush1.bf16.msra.mxu0 %v841
    %971 = vmatprep.subr.bf16.mxu0 %v844
    %972 = vmatpush1.bf16.msra.mxu0 %v843
    %973 = vmatprep.subr.bf16.mxu0 %v846
    %974 = vmatpush1.bf16.msra.mxu0 %v845
    %975 = vmatprep.subr.bf16.mxu0 %v848
    %976 = vmatpush1.bf16.msra.mxu0 %v847
    %977 = vmatprep.subr.bf16.mxu0 %v850
    %978 = vmatpush1.bf16.msra.mxu0 %v849
    %979 = vmatprep.subr.bf16.mxu0 %v852
    %980 = vmatpush1.bf16.msra.mxu0 %v851
    %981 = vmatprep.subr.bf16.mxu0 %v854
    %982 = vmatpush1.bf16.msra.mxu0 %v853
    %983 = vmatprep.subr.bf16.mxu0 %v856
    %984 = vmatpush1.bf16.msra.mxu0 %v855
    %985 = vmatprep.subr.bf16.mxu0 %v858
    %986 = vmatpush1.bf16.msra.mxu0 %v857
    %987 = vmatprep.subr.bf16.mxu0 %v860
    %988 = vmatpush1.bf16.msra.mxu0 %v859
    %989 = vmatprep.subr.bf16.mxu0 %v862
    %990 = vmatpush1.bf16.msra.mxu0 %v861
    %991 = vmatprep.subr.bf16.mxu0 %v864
    %992 = vmatpush1.bf16.msra.mxu0 %v863
    %993 = vmatprep.subr.bf16.mxu0 %v866
    %994 = vmatpush1.bf16.msra.mxu0 %v865
    %995 = vmatprep.mubr.bf16.mxu0 %v564
    %996 = vmatmul.mubr.bf16.gmra.mrb[0].mxu0 %v563
    %v997 = vpop.f32.mrb[0].mxu0
    %v998 = vadd.f32 %v636, %v997
    %v999 = vpop.f32.mrb[0].mxu0
    %v1000 = vadd.f32 %v640, %v999
    %v1001 = vpop.f32.mrb[0].mxu0
    %v1002 = vpop.f32.mrb[0].mxu0
    %1003 = vdwg.mxu0
    %1004 = vmatprep.subr.bf16.mxu0 %v868
    %1005 = vmatpush1.bf16.msra.mxu0 %v867
    %1006 = vmatprep.subr.bf16.mxu0 %v870
    %1007 = vmatpush1.bf16.msra.mxu0 %v869
    %1008 = vmatprep.subr.bf16.mxu0 %v872
    %1009 = vmatpush1.bf16.msra.mxu0 %v871
    %1010 = vmatprep.subr.bf16.mxu0 %v874
    %1011 = vmatpush1.bf16.msra.mxu0 %v873
    %1012 = vmatprep.subr.bf16.mxu0 %v876
    %1013 = vmatpush1.bf16.msra.mxu0 %v875
    %1014 = vmatprep.subr.bf16.mxu0 %v878
    %1015 = vmatpush1.bf16.msra.mxu0 %v877
    %1016 = vmatprep.subr.bf16.mxu0 %v880
    %1017 = vmatpush1.bf16.msra.mxu0 %v879
    %1018 = vmatprep.subr.bf16.mxu0 %v882
    %1019 = vmatpush1.bf16.msra.mxu0 %v881
    %1020 = vmatprep.subr.bf16.mxu0 %v884
    %1021 = vmatpush1.bf16.msra.mxu0 %v883
    %1022 = vmatprep.subr.bf16.mxu0 %v886
    %1023 = vmatpush1.bf16.msra.mxu0 %v885
    %1024 = vmatprep.subr.bf16.mxu0 %v888
    %1025 = vmatpush1.bf16.msra.mxu0 %v887
    %1026 = vmatprep.subr.bf16.mxu0 %v890
    %1027 = vmatpush1.bf16.msra.mxu0 %v889
    %1028 = vmatprep.subr.bf16.mxu0 %v892
    %1029 = vmatpush1.bf16.msra.mxu0 %v891
    %1030 = vmatprep.subr.bf16.mxu0 %v894
    %1031 = vmatpush1.bf16.msra.mxu0 %v893
    %1032 = vmatprep.subr.bf16.mxu0 %v896
    %1033 = vmatpush1.bf16.msra.mxu0 %v895
    %1034 = vmatprep.subr.bf16.mxu0 %v898
    %1035 = vmatpush1.bf16.msra.mxu0 %v897
    %1036 = vmatprep.mubr.bf16.mxu0 %v566
    %1037 = vmatmul.mubr.bf16.gmra.mrb[0].mxu0 %v565
    %v1038 = vpop.f32.mrb[0].mxu0
    %v1039 = vadd.f32 %v998, %v1038
    %v1040 = vpop.f32.mrb[0].mxu0
    %v1041 = vadd.f32 %v1000, %v1040
    %v1042 = vpop.f32.mrb[0].mxu0
    %v1043 = vpop.f32.mrb[0].mxu0
    %1044 = vdwg.mxu0
    %vm1045 = vcmp.gt.f32.partialorder %v1039, 0.0
    %vm1046 = vcmp.gt.f32.partialorder %v1041, 0.0
    %v1047 = vmul.f32 %v1039, 0.01
    %v1048 = vmul.f32 %v1041, 0.01
    %v1049 = vsel %vm1045, %v1039, %v1047
    %v1050 = vsel %vm1046, %v1041, %v1048
    %v1051 = vpack.c.bf16 %v1049, %v1049
    %v1052 = vpack.c.bf16 %v1050, %v1050
    %v1053 = vld [vmem:[#allocation11] sm:$0xf]
    %v1054 = vld [vmem:[#allocation11 + $0x4] sm:$0xf]
    %v1055 = vld [vmem:[#allocation11 + $0x8] sm:$0xf]
    %v1056 = vld [vmem:[#allocation11 + $0xc] sm:$0xf]
    %v1057 = vld [vmem:[#allocation11 + $0x10] sm:$0xf]
    %v1058 = vld [vmem:[#allocation11 + $0x14] sm:$0xf]
    %v1059 = vld [vmem:[#allocation11 + $0x18] sm:$0xf]
    %v1060 = vld [vmem:[#allocation11 + $0x1c] sm:$0xf]
    %v1061 = vld [vmem:[#allocation11 + $0x20] sm:$0xf]
    %v1062 = vld [vmem:[#allocation11 + $0x24] sm:$0xf]
    %v1063 = vld [vmem:[#allocation11 + $0x28] sm:$0xf]
    %v1064 = vld [vmem:[#allocation11 + $0x2c] sm:$0xf]
    %v1065 = vld [vmem:[#allocation11 + $0x30] sm:$0xf]
    %v1066 = vld [vmem:[#allocation11 + $0x34] sm:$0xf]
    %v1067 = vld [vmem:[#allocation11 + $0x38] sm:$0xf]
    %v1068 = vld [vmem:[#allocation11 + $0x3c] sm:$0xf]
    %v1069 = vld [vmem:[#allocation11 + $0x40] sm:$0xf]
    %v1070 = vld [vmem:[#allocation11 + $0x44] sm:$0xf]
    %v1071 = vld [vmem:[#allocation11 + $0x48] sm:$0xf]
    %v1072 = vld [vmem:[#allocation11 + $0x4c] sm:$0xf]
    %v1073 = vld [vmem:[#allocation11 + $0x50] sm:$0xf]
    %v1074 = vld [vmem:[#allocation11 + $0x54] sm:$0xf]
    %v1075 = vld [vmem:[#allocation11 + $0x58] sm:$0xf]
    %v1076 = vld [vmem:[#allocation11 + $0x5c] sm:$0xf]
    %v1077 = vld [vmem:[#allocation11 + $0x60] sm:$0xf]
    %v1078 = vld [vmem:[#allocation11 + $0x64] sm:$0xf]
    %v1079 = vld [vmem:[#allocation11 + $0x68] sm:$0xf]
    %v1080 = vld [vmem:[#allocation11 + $0x6c] sm:$0xf]
    %v1081 = vld [vmem:[#allocation11 + $0x70] sm:$0xf]
    %v1082 = vld [vmem:[#allocation11 + $0x74] sm:$0xf]
    %v1083 = vld [vmem:[#allocation11 + $0x78] sm:$0xf]
    %v1084 = vld [vmem:[#allocation11 + $0x7c] sm:$0xf]
    %v1085 = vld [vmem:[#allocation13] sm:$0x1]
    %v1087 = vlaneseq
    %v1088 = vshrl.u32 %v1087, 7
    %v1089 = vsub.s32 0, %v1088
    %v1090 = vrot.slane %v1085, %v1089
    %v1124 = vunpack.c.l.b16 %v1053
    %v1125 = vunpack.c.l.b16 %v1054
    %v1126 = vunpack.c.l.b16 %v1055
    %v1127 = vunpack.c.l.b16 %v1056
    %v1128 = vunpack.c.l.b16 %v1057
    %v1129 = vunpack.c.l.b16 %v1058
    %v1130 = vunpack.c.l.b16 %v1059
    %v1131 = vunpack.c.l.b16 %v1060
    %v1132 = vunpack.c.l.b16 %v1061
    %v1133 = vunpack.c.l.b16 %v1062
    %v1134 = vunpack.c.l.b16 %v1063
    %v1135 = vunpack.c.l.b16 %v1064
    %v1136 = vunpack.c.l.b16 %v1065
    %v1137 = vunpack.c.l.b16 %v1066
    %v1138 = vunpack.c.l.b16 %v1067
    %v1139 = vunpack.c.l.b16 %v1068
    %v1140 = vunpack.c.l.b16 %v1069
    %v1141 = vunpack.c.l.b16 %v1070
    %v1142 = vunpack.c.l.b16 %v1071
    %v1143 = vunpack.c.l.b16 %v1072
    %v1144 = vunpack.c.l.b16 %v1073
    %v1145 = vunpack.c.l.b16 %v1074
    %v1146 = vunpack.c.l.b16 %v1075
    %v1147 = vunpack.c.l.b16 %v1076
    %v1148 = vunpack.c.l.b16 %v1077
    %v1149 = vunpack.c.l.b16 %v1078
    %v1150 = vunpack.c.l.b16 %v1079
    %v1151 = vunpack.c.l.b16 %v1080
    %v1152 = vunpack.c.l.b16 %v1081
    %v1153 = vunpack.c.l.b16 %v1082
    %v1154 = vunpack.c.l.b16 %v1083
    %v1155 = vunpack.c.l.b16 %v1084
    %v1156 = vpack.c.b16 %v1125, %v1124
    %v1157 = vpack.c.b16 %v1127, %v1126
    %v1158 = vpack.c.b16 %v1129, %v1128
    %v1159 = vpack.c.b16 %v1131, %v1130
    %v1160 = vpack.c.b16 %v1133, %v1132
    %v1161 = vpack.c.b16 %v1135, %v1134
    %v1162 = vpack.c.b16 %v1137, %v1136
    %v1163 = vpack.c.b16 %v1139, %v1138
    %v1164 = vpack.c.b16 %v1141, %v1140
    %v1165 = vpack.c.b16 %v1143, %v1142
    %v1166 = vpack.c.b16 %v1145, %v1144
    %v1167 = vpack.c.b16 %v1147, %v1146
    %v1168 = vpack.c.b16 %v1149, %v1148
    %v1169 = vpack.c.b16 %v1151, %v1150
    %v1170 = vpack.c.b16 %v1153, %v1152
    %v1171 = vpack.c.b16 %v1155, %v1154
    %1188 = vmatprep.subr.bf16.mxu0 0
    %1189 = vmatpush1.bf16.msra.mxu0 %v1156
    %1190 = vmatprep.subr.bf16.mxu0 0
    %1191 = vmatpush1.bf16.msra.mxu0 %v1157
    %1192 = vmatprep.subr.bf16.mxu0 0
    %1193 = vmatpush1.bf16.msra.mxu0 %v1158
    %1194 = vmatprep.subr.bf16.mxu0 0
    %1195 = vmatpush1.bf16.msra.mxu0 %v1159
    %1196 = vmatprep.subr.bf16.mxu0 0
    %1197 = vmatpush1.bf16.msra.mxu0 %v1160
    %1198 = vmatprep.subr.bf16.mxu0 0
    %1199 = vmatpush1.bf16.msra.mxu0 %v1161
    %1200 = vmatprep.subr.bf16.mxu0 0
    %1201 = vmatpush1.bf16.msra.mxu0 %v1162
    %1202 = vmatprep.subr.bf16.mxu0 0
    %1203 = vmatpush1.bf16.msra.mxu0 %v1163
    %1204 = vmatprep.subr.bf16.mxu0 0
    %1205 = vmatpush1.bf16.msra.mxu0 %v1164
    %1206 = vmatprep.subr.bf16.mxu0 0
    %1207 = vmatpush1.bf16.msra.mxu0 %v1165
    %1208 = vmatprep.subr.bf16.mxu0 0
    %1209 = vmatpush1.bf16.msra.mxu0 %v1166
    %1210 = vmatprep.subr.bf16.mxu0 0
    %1211 = vmatpush1.bf16.msra.mxu0 %v1167
    %1212 = vmatprep.subr.bf16.mxu0 0
    %1213 = vmatpush1.bf16.msra.mxu0 %v1168
    %1214 = vmatprep.subr.bf16.mxu0 0
    %1215 = vmatpush1.bf16.msra.mxu0 %v1169
    %1216 = vmatprep.subr.bf16.mxu0 0
    %1217 = vmatpush1.bf16.msra.mxu0 %v1170
    %1218 = vmatprep.subr.bf16.mxu0 0
    %1219 = vmatpush1.bf16.msra.mxu0 %v1171
    %1220 = vmatprep.mubr.bf16.mxu0 %v1052
    %1221 = vmatmul.mubr.bf16.gmra.mrb[0].mxu0 %v1051
    %v1222 = vpop.f32.mrb[0].mxu0
    %v1223 = vadd.f32 %v1090, %v1222
    %v1224 = vpop.f32.mrb[0].mxu0
    %v1225 = vpop.f32.mrb[0].mxu0
    %v1226 = vpop.f32.mrb[0].mxu0
    %1227 = vdwg.mxu0
    %1228 = vst [vmem:[#allocation14] sm:$0xff] %v1223
    // Predicated region
    $region74: #{dqn_q_func_forward.1} parent=1 // pred_check
      _
    $region75: #{dqn_q_func_forward.1} parent=1 // pred_check_branch
      %1230 = sbr.rel (0) target = $region77
    $region76: #{dqn_q_func_forward.1} parent=1 // pred_region
      %s1232 = ssub.s32 128, 128
      %1233 = vsyncadd [#allocation4], %s1232
      %s1235 = sshll.u32 [#allocation14], 4
      %s1236 = int_to_ptr.vmem [resolvable:$true] %s1235
      %1238 = dma.vmem_to_hbm [thread:$0]  %s1236, 128, %s11, [#allocation4]
    $region77: #{dqn_q_func_forward.1} parent=1 // pred_fallthru
      _
    // Predicated region
    $region78: #{dqn_q_func_forward.1} parent=1 // pred_check
      _
    $region79: #{dqn_q_func_forward.1} parent=1 // pred_check_branch
      %1240 = sbr.rel (0) target = $region81
    $region80: #{dqn_q_func_forward.1} parent=1 // pred_region
      %1241 = dma.done [#allocation4], 128
    $region81: #{dqn_q_func_forward.1} parent=1 // pred_fallthru
      _
    %1242 = vsyncpa [#allocation3], 1
    %1243 = vsyncpa [#allocation6], 1
    %1244 = vsyncpa [#allocation9], 1
    %1245 = vsyncpa [#allocation12], 1
    %1246 = vsyncpa [#allocation4], 1

</llo_original>
